<compile_context>
chip_gen: v7x
topology: tpu7x:2x2x1
jax: 0.10.0
libtpu: 0.0.40
codegen_flags: <defaults>
</compile_context>

<pallas_src>
import functools

import jax
import jax.numpy as jnp
from jax.experimental import pallas as pl
from jax.experimental.pallas import tpu as pltpu


def _round_up(n, m):
    return ((n + m - 1) // m) * m


def _cdiv(a, b):
    return (a + b - 1) // b


def _tile_bytes(rows, cols, itemsize):
    """VMEM footprint of a (rows, cols) buffer: lanes pad to 128, sublanes to 32B."""
    sub = max(1, 32 // itemsize)
    return _round_up(max(rows, 1), sub) * _round_up(max(cols, 1), 128) * itemsize


def _make_mlp_kernel(num_layers, compute_dtype):
    """Fused MLP kernel body.

    Compute runs in the transposed orientation (features, rows) so rows sit on
    the 128-lane axis for every matmul / bias-add / ReLU; only the final tiny
    (out_dim, row_tile) tile is transposed before the row-major store.

    refs = (x_ref, w0, b0, ..., w_{L-1}, b_{L-1}, o_ref)
      x_ref : (row_tile, in_dim)    rows on sublanes, features on lanes
      w_l   : (d_out, d_in)         PyTorch nn.Linear orientation
      b_l   : (d_out, 1)            column bias, broadcast over rows (lanes)
      o_ref : (row_tile, out_dim)   row-major output block
    ReLU after every layer except the last.  Accumulation is always f32.
    """

    def kernel(*refs):
        x_ref = refs[0]
        o_ref = refs[-1]
        wb = refs[1:-1]

        x = x_ref[...].astype(compute_dtype)           # (rt, in_dim)
        w0 = wb[0][...].astype(compute_dtype)          # (d1, in_dim)
        b0 = wb[1][...]                                # (d1, 1) f32
        # h = W0 @ x.T -> (d1, rt): contract the feature axis of both operands
        # (q @ k.T MXU pattern); no in-kernel transpose of x needed.
        h = jax.lax.dot_general(
            w0, x, dimension_numbers=(((1,), (1,)), ((), ())),
            preferred_element_type=jnp.float32) + b0
        if num_layers > 1:
            h = jnp.maximum(h, 0.0)                    # ReLU on the VPU (f32)

        for layer in range(1, num_layers):
            w = wb[2 * layer][...].astype(compute_dtype)     # (d_out, d_in)
            b = wb[2 * layer + 1][...]                       # (d_out, 1) f32
            h = jnp.dot(w, h.astype(compute_dtype),
                        preferred_element_type=jnp.float32) + b
            if layer < num_layers - 1:
                h = jnp.maximum(h, 0.0)

        # (out_dim, rt) -> (rt, out_dim): one small XLU transpose per block,
        # stored straight into the row-major output (no wrapper transpose pass).
        o_ref[...] = jnp.transpose(h).astype(o_ref.dtype)

    return kernel


def init_mlp_params(key, in_dim, out_dim, hidden_list, dtype=jnp.float32):
    """Uniform init with the same shapes/orientation as nn.Linear.

    Weight: (out, in)   (PyTorch orientation)
    Bias  : (out, 1)    (column vector, broadcasts over the row/lane axis)
    """
    dims = [in_dim] + list(hidden_list) + [out_dim]
    params = []
    for i in range(len(dims) - 1):
        fan_in, fan_out = dims[i], dims[i + 1]
        key, kw, kb = jax.random.split(key, 3)
        bound = float(fan_in) ** -0.5
        w = jax.random.uniform(kw, (fan_out, fan_in), dtype=dtype,
                               minval=-bound, maxval=bound)
        b = jax.random.uniform(kb, (fan_out, 1), dtype=dtype,
                               minval=-bound, maxval=bound)
        params.append((w, b))
    return params


@functools.partial(jax.jit, static_argnames=("row_tile", "use_bf16_matmul"))
def mlp_forward(x, params, *, row_tile=None, use_bf16_matmul=False):
    """Apply the MLP over the last axis of x with a single fused Pallas kernel.

    row_tile: optional *cap* on the row tile (rounded to a multiple of 128);
              by default the tile is derived from the row count (target ~4
              grid steps) and the chip's VMEM capacity.
    use_bf16_matmul: cast x and weights to bf16 at the HBM boundary (works on
              v5e/v6e/v7x MXUs); this quantizes the input — accumulation,
              bias add, ReLU and the output stay f32 / x.dtype.
    """
    orig_shape = x.shape
    in_dim = orig_shape[-1]
    out_dim = params[-1][0].shape[0]                   # weights are (out, in)
    num_layers = len(params)
    dims = [in_dim] + [w.shape[0] for (w, _) in params]
    out_dtype = x.dtype
    out_itemsize = x.dtype.itemsize

    # Flatten leading dims to rows (== x.view(-1, in_dim) in PyTorch).
    x2d = x.reshape(-1, in_dim)
    n_rows = x2d.shape[0]

    compute_dtype = jnp.bfloat16 if use_bf16_matmul else jnp.float32
    if use_bf16_matmul:
        # bf16 at the HBM boundary: x is the dominant DMA term, not the weights.
        x2d = x2d.astype(jnp.bfloat16)
    flat_params = []
    for (w, b) in params:
        flat_params.append(w.astype(jnp.bfloat16) if use_bf16_matmul else w)
        flat_params.append(b)                          # bias stays f32
    x_itemsize = x2d.dtype.itemsize
    w_itemsize = 2 if use_bf16_matmul else 4

    # --- VMEM accounting (lane/sublane-padded, as Mosaic will allocate it) ----
    def vmem_estimate(rt):
        est = 2 * _tile_bytes(rt, in_dim, x_itemsize)        # x: double-buffered
        est += 2 * _tile_bytes(rt, out_dim, out_itemsize)    # out: double-buffered
        for li in range(num_layers):
            est += _tile_bytes(dims[li + 1], dims[li], w_itemsize)  # weight
            est += _tile_bytes(dims[li + 1], 1, 4)                  # bias -> 128 lanes
        # Two consecutive layer activations live at each boundary, (feat, rt), f32.
        act_rows = max(dims[li] + dims[li + 1] for li in range(num_layers))
        est += _tile_bytes(act_rows, rt, 4)
        est += _tile_bytes(rt, out_dim, 4)                   # transposed result tile
        return est

    # Generation-aware budget: 128 MiB physical VMEM on v5e/v6e, 64 MiB on v7x.
    try:
        vmem_cap = int(pltpu.get_tpu_info().vmem_capacity_bytes)
    except Exception:
        vmem_cap = 64 * 1024 * 1024            # conservative fallback (v7x-sized)
    vmem_budget = int(0.75 * vmem_cap)

    # --- row-tile sizing ------------------------------------------------------
    # Multiple of 128 (lane-dense intermediates), ~4 grid steps so both v7x
    # TensorCores get work, biggest tile the VMEM budget allows (measured
    # roofline fractions: 256 -> 63%, 512 -> 85%, 1024 -> 86%).
    rt_cap = 1024 if row_tile is None else max(128, _round_up(int(row_tile), 128))
    if n_rows <= 128:
        rt = n_rows                            # single full-extent block (grid == 1)
    else:
        rt = _round_up(_cdiv(n_rows, 4), 128)
        rt = max(128, min(rt, rt_cap))
        while rt > 128 and vmem_estimate(rt) > vmem_budget:
            rt = max(128, _round_up(rt // 2, 128))
    grid = (_cdiv(n_rows, rt),)                # no jnp.pad: ragged tail handled
                                               # by Pallas partial blocks.

    vmem_limit = int(min(int(0.9 * vmem_cap),
                         max(32 * 1024 * 1024, 2 * vmem_estimate(rt))))

    kernel = _make_mlp_kernel(num_layers, compute_dtype)

    # x tile per grid step; weights/biases are grid-invariant whole-array VMEM
    # residents (no per-step re-DMA / double-buffer churn).
    in_specs = [pl.BlockSpec((rt, in_dim), lambda i: (i, 0))]
    for _ in range(2 * num_layers):
        in_specs.append(pl.BlockSpec(memory_space=pltpu.MemorySpace.VMEM))

    flops = 2 * n_rows * sum(dims[i] * dims[i + 1] for i in range(num_layers))
    param_bytes = sum(int(p.size) * p.dtype.itemsize for p in flat_params)
    bytes_accessed = (n_rows * in_dim * x_itemsize + param_bytes
                      + n_rows * out_dim * out_itemsize)

    out2d = pl.pallas_call(
        kernel,
        out_shape=jax.ShapeDtypeStruct((n_rows, out_dim), out_dtype),
        grid_spec=pltpu.PrefetchScalarGridSpec(
            num_scalar_prefetch=0,
            grid=grid,
            in_specs=in_specs,
            out_specs=pl.BlockSpec((rt, out_dim), lambda i: (i, 0)),
        ),
        compiler_params=pltpu.CompilerParams(
            dimension_semantics=("parallel",),       # megacore-shardable rows
            vmem_limit_bytes=vmem_limit),
        cost_estimate=pl.CostEstimate(flops=flops, transcendentals=0,
                                      bytes_accessed=bytes_accessed),
    )(x2d, *flat_params)

    # Output is already row-major (n_rows, out_dim): no wrapper transpose.
    return out2d.reshape(*orig_shape[:-1], out_dim)


def mlp_reference(x, params):
    """Pure-JAX reference of the same forward pass (for verification)."""
    orig_shape = x.shape
    h = x.reshape(-1, orig_shape[-1]).astype(jnp.float32)
    for i, (w, b) in enumerate(params):
        h = h @ w.T + b[:, 0]
        if i < len(params) - 1:
            h = jnp.maximum(h, 0.0)
    return h.astype(x.dtype).reshape(*orig_shape[:-1], -1)


if __name__ == "__main__":
    key = jax.random.PRNGKey(0)
    k_x, k_p = jax.random.split(key)

    # MLP over the last axis; 2 * 32 * 32 = 2048 rows -> rt = 512, 4 grid steps.
    in_dim, out_dim, hidden_list = 16, 8, [32, 32]
    params = init_mlp_params(k_p, in_dim, out_dim, hidden_list)

    x = jax.random.normal(k_x, (2, 32, 32, in_dim), dtype=jnp.float32)
    y_ref = mlp_reference(x, params)

    # f32 path (exact-ish vs reference).
    y = jax.block_until_ready(mlp_forward(x, params))
    assert y.shape == (2, 32, 32, out_dim), y.shape
    assert jnp.allclose(y, y_ref, atol=1e-4, rtol=1e-4), "f32 mismatch vs reference"

    # bf16 HBM-boundary path (x + weights bf16, f32 accumulation) — looser tol.
    y16 = jax.block_until_ready(mlp_forward(x, params, use_bf16_matmul=True))
    assert y16.shape == (2, 32, 32, out_dim), y16.shape
    assert jnp.allclose(y16, y_ref, atol=5e-2, rtol=5e-2), "bf16 mismatch vs reference"

    # Ragged row count (2 * 36 * 29 = 2088 rows): exercises the no-pad partial
    # last block and confirms tail rows are written correctly.
    x2 = jax.random.normal(jax.random.PRNGKey(1), (2, 36, 29, in_dim),
                           dtype=jnp.float32)
    y2 = jax.block_until_ready(mlp_forward(x2, params))
    y2_ref = mlp_reference(x2, params)
    assert y2.shape == (2, 36, 29, out_dim), y2.shape
    assert jnp.allclose(y2, y2_ref, atol=1e-4, rtol=1e-4), "ragged-rows mismatch"

    print("KERNEL_OK")
</pallas_src>

<mosaic_0001>
module attributes {stable_mosaic.version = 11 : i64} {
  func.func @kernel(%arg0: i32, %arg1: memref<512x16xf32, #tpu.memory_space<vmem>>, %arg2: memref<32x16xf32, #tpu.memory_space<vmem>>, %arg3: memref<32x1xf32, #tpu.memory_space<vmem>>, %arg4: memref<32x32xf32, #tpu.memory_space<vmem>>, %arg5: memref<32x1xf32, #tpu.memory_space<vmem>>, %arg6: memref<8x32xf32, #tpu.memory_space<vmem>>, %arg7: memref<8x1xf32, #tpu.memory_space<vmem>>, %arg8: memref<512x8xf32, #tpu.memory_space<vmem>>) attributes {dimension_semantics = [#tpu.dimension_semantics<parallel>], iteration_bounds = array<i64: 4>, scalar_prefetch = 0 : i64, scratch_operands = 0 : i64, tpu.core_type = #tpu.core_type<tc>, window_params = [{transform_indices = @transform_0, window_bounds = array<i64: 512, 16>}, {pipeline_mode = #tpu.pipeline_mode<synchronous>, transform_indices = @transform_1, window_bounds = array<i64: 32, 16>}, {pipeline_mode = #tpu.pipeline_mode<synchronous>, transform_indices = @transform_2, window_bounds = array<i64: 32, 1>}, {pipeline_mode = #tpu.pipeline_mode<synchronous>, transform_indices = @transform_3, window_bounds = array<i64: 32, 32>}, {pipeline_mode = #tpu.pipeline_mode<synchronous>, transform_indices = @transform_4, window_bounds = array<i64: 32, 1>}, {pipeline_mode = #tpu.pipeline_mode<synchronous>, transform_indices = @transform_5, window_bounds = array<i64: 8, 32>}, {pipeline_mode = #tpu.pipeline_mode<synchronous>, transform_indices = @transform_6, window_bounds = array<i64: 8, 1>}, {transform_indices = @transform_7, window_bounds = array<i64: 512, 8>}]} {
    %c0 = arith.constant 0 : index
    %c0_0 = arith.constant 0 : index
    %0 = vector.load %arg1[%c0, %c0_0] : memref<512x16xf32, #tpu.memory_space<vmem>>, vector<512x16xf32>
    %c0_1 = arith.constant 0 : index
    %c0_2 = arith.constant 0 : index
    %1 = vector.load %arg2[%c0_1, %c0_2] : memref<32x16xf32, #tpu.memory_space<vmem>>, vector<32x16xf32>
    %c0_3 = arith.constant 0 : index
    %c0_4 = arith.constant 0 : index
    %2 = vector.load %arg3[%c0_3, %c0_4] : memref<32x1xf32, #tpu.memory_space<vmem>>, vector<32x1xf32>
    %cst = arith.constant dense<0.000000e+00> : vector<32x512xf32>
    %3 = tpu.matmul %1, %0, %cst {dimension_numbers = #tpu.dot_dimension_numbers<[1], [1], [0], [0], [0, 0, 1, 0], [], []>} : vector<32x16xf32>, vector<512x16xf32>, vector<32x512xf32> -> vector<32x512xf32>
    %4 = vector.broadcast %2 : vector<32x1xf32> to vector<32x512xf32>
    %5 = arith.addf %3, %4 : vector<32x512xf32>
    %cst_5 = arith.constant 0.000000e+00 : f32
    %6 = vector.broadcast %cst_5 : f32 to vector<32x512xf32>
    %7 = arith.maximumf %5, %6 : vector<32x512xf32>
    %c0_6 = arith.constant 0 : index
    %c0_7 = arith.constant 0 : index
    %8 = vector.load %arg4[%c0_6, %c0_7] : memref<32x32xf32, #tpu.memory_space<vmem>>, vector<32x32xf32>
    %c0_8 = arith.constant 0 : index
    %c0_9 = arith.constant 0 : index
    %9 = vector.load %arg5[%c0_8, %c0_9] : memref<32x1xf32, #tpu.memory_space<vmem>>, vector<32x1xf32>
    %cst_10 = arith.constant dense<0.000000e+00> : vector<32x512xf32>
    %10 = tpu.matmul %8, %7, %cst_10 {dimension_numbers = #tpu.dot_dimension_numbers<[1], [0], [0], [1], [0, 0, 1, 1], [], []>} : vector<32x32xf32>, vector<32x512xf32>, vector<32x512xf32> -> vector<32x512xf32>
    %11 = vector.broadcast %9 : vector<32x1xf32> to vector<32x512xf32>
    %12 = arith.addf %10, %11 : vector<32x512xf32>
    %cst_11 = arith.constant 0.000000e+00 : f32
    %13 = vector.broadcast %cst_11 : f32 to vector<32x512xf32>
    %14 = arith.maximumf %12, %13 : vector<32x512xf32>
    %c0_12 = arith.constant 0 : index
    %c0_13 = arith.constant 0 : index
    %15 = vector.load %arg6[%c0_12, %c0_13] : memref<8x32xf32, #tpu.memory_space<vmem>>, vector<8x32xf32>
    %c0_14 = arith.constant 0 : index
    %c0_15 = arith.constant 0 : index
    %16 = vector.load %arg7[%c0_14, %c0_15] : memref<8x1xf32, #tpu.memory_space<vmem>>, vector<8x1xf32>
    %cst_16 = arith.constant dense<0.000000e+00> : vector<8x512xf32>
    %17 = tpu.matmul %15, %14, %cst_16 {dimension_numbers = #tpu.dot_dimension_numbers<[1], [0], [0], [1], [0, 0, 1, 1], [], []>} : vector<8x32xf32>, vector<32x512xf32>, vector<8x512xf32> -> vector<8x512xf32>
    %18 = vector.broadcast %16 : vector<8x1xf32> to vector<8x512xf32>
    %19 = arith.addf %17, %18 : vector<8x512xf32>
    %20 = tpu.transpose %19, [1, 0] : vector<8x512xf32> -> vector<512x8xf32>
    %c0_17 = arith.constant 0 : index
    %c0_18 = arith.constant 0 : index
    %21 = vector.load %arg8[%c0_17, %c0_18] : memref<512x8xf32, #tpu.memory_space<vmem>>, vector<512x8xf32>
    tpu.vector_store %arg8[%c0_17, %c0_18], %20 {strides = array<i32>} : memref<512x8xf32, #tpu.memory_space<vmem>>, vector<512x8xf32>,
    return
  }
  func.func @transform_0(%arg0: i32) -> (i32, i32) {
    %c0_i32 = arith.constant 0 : i32
    %c0_i32_0 = arith.constant 0 : i32
    return %arg0, %c0_i32 : i32, i32
  }
  func.func @transform_1(%arg0: i32) -> (i32, i32) {
    %c0_i32 = arith.constant 0 : i32
    %c0_i32_0 = arith.constant 0 : i32
    %c0_i32_1 = arith.constant 0 : i32
    return %c0_i32, %c0_i32_0 : i32, i32
  }
  func.func @transform_2(%arg0: i32) -> (i32, i32) {
    %c0_i32 = arith.constant 0 : i32
    %c0_i32_0 = arith.constant 0 : i32
    %c0_i32_1 = arith.constant 0 : i32
    return %c0_i32, %c0_i32_0 : i32, i32
  }
  func.func @transform_3(%arg0: i32) -> (i32, i32) {
    %c0_i32 = arith.constant 0 : i32
    %c0_i32_0 = arith.constant 0 : i32
    %c0_i32_1 = arith.constant 0 : i32
    return %c0_i32, %c0_i32_0 : i32, i32
  }
  func.func @transform_4(%arg0: i32) -> (i32, i32) {
    %c0_i32 = arith.constant 0 : i32
    %c0_i32_0 = arith.constant 0 : i32
    %c0_i32_1 = arith.constant 0 : i32
    return %c0_i32, %c0_i32_0 : i32, i32
  }
  func.func @transform_5(%arg0: i32) -> (i32, i32) {
    %c0_i32 = arith.constant 0 : i32
    %c0_i32_0 = arith.constant 0 : i32
    %c0_i32_1 = arith.constant 0 : i32
    return %c0_i32, %c0_i32_0 : i32, i32
  }
  func.func @transform_6(%arg0: i32) -> (i32, i32) {
    %c0_i32 = arith.constant 0 : i32
    %c0_i32_0 = arith.constant 0 : i32
    %c0_i32_1 = arith.constant 0 : i32
    return %c0_i32, %c0_i32_0 : i32, i32
  }
  func.func @transform_7(%arg0: i32) -> (i32, i32) {
    %c0_i32 = arith.constant 0 : i32
    %c0_i32_0 = arith.constant 0 : i32
    return %arg0, %c0_i32 : i32, i32
  }
}

</mosaic_0001>

<llo_original>
// kernel: mlp_forward.1
$region0: #{mlp_forward.1}
  #allocation0 [shape = 'u32[]', space=smem, size = 0x4, offset = 0x4, fixed_abs, tag = 'smem constant byte address 0x4 - core index']
  #allocation1 [shape = 'u32[144,128]{1,0:T(1,128)}', space=vmem, size = 0x12000, scoped, tag = 'internal scratch']
  %s0 = inlined_call_operand.vmem [shape: f32[2048,16], index: 0, kind: input, shape index: {}]
  %s1 = inlined_call_operand.vmem [shape: f32[32,16], index: 1, kind: input, shape index: {}]
  %s2 = inlined_call_operand.vmem [shape: f32[32,1], index: 2, kind: input, shape index: {}]
  %s3 = inlined_call_operand.vmem [shape: f32[32,32], index: 3, kind: input, shape index: {}]
  %s4 = inlined_call_operand.vmem [shape: f32[32,1], index: 4, kind: input, shape index: {}]
  %s5 = inlined_call_operand.vmem [shape: f32[8,32], index: 5, kind: input, shape index: {}]
  %s6 = inlined_call_operand.vmem [shape: f32[8,1], index: 6, kind: input, shape index: {}]
  %s7 = inlined_call_operand.vmem [shape: f32[2048,8], index: 7, kind: output, shape index: {}]
  %s8 = sld [smem:[#allocation0]]
  $region61: #{mlp_forward.1} parent=0
    _
  %s10 = ssub.s32 1, %s8
  %s11 = scalar_select 0, %s10, %s8
  loop: start=0, step=1, limit=6
  $region2: #{mlp_forward.1} parent=0 // loop_pre_header
    _
  $region3: #{mlp_forward.1} parent=0 // loop_header
    %s13 = sphi 0, %s17
    %p14 = scmp.ge.s32.totalorder %s13, 6
    %s23 = sphi 0, %s25
    %s26 = sphi 0, %s23
    %s27 = sphi 0, %s26
    %s43 = sphi 0, %s27
    %s47 = sphi 0, %s47
    %s49 = sphi 0, %s47
    %s50 = sphi 0, %s49
    %s64 = sphi 0, %s50
    %s68 = sphi 0, %s68
    %s70 = sphi 0, %s68
    %s71 = sphi 0, %s70
    %s85 = sphi 0, %s71
    %s89 = sphi 0, %s89
    %s91 = sphi 0, %s89
    %s92 = sphi 0, %s91
    %s106 = sphi 0, %s92
    %s110 = sphi 0, %s110
    %s112 = sphi 0, %s110
    %s113 = sphi 0, %s112
    %s127 = sphi 0, %s113
    %s131 = sphi 0, %s131
    %s133 = sphi 0, %s131
    %s134 = sphi 0, %s133
    %s148 = sphi 0, %s134
    %s152 = sphi 0, %s152
    %s154 = sphi 0, %s152
    %s155 = sphi 0, %s154
    %s169 = sphi 0, %s155
    %s175 = sphi 0, %s177
    %s178 = sphi 0, %s175
    %s179 = sphi 0, %s178
    %s195 = sphi 0, %s179
  $region4: #{mlp_forward.1} parent=0 // loop_header_branch
    %16 = sbr.rel (%p14) target = $region8
  $region5: #{mlp_forward.1} parent=0 // loop_body
    %s18 = ssub.s32 %s13, 1
    %s19 = ssub.s32 %s13, 2
    %s20 = sadd.s32 %s13, 1
    %s21 = ssub.s32 %s13, %s20
    %p22 = scmp.eq.s32.totalorder %s21, 0
    %s24 = sadd.s32 %s23, 1
    %s25 = scalar_select %p22, %s23, %s24
    %p28 = pneg %p22
    %p29 = scmp.eq.s32.totalorder %s13, 3
    %p30 = por %p28, %p29
    %p31 = scmp.ne.s32.totalorder %s23, %s26
    %p32 = scmp.eq.s32.totalorder %s13, 0
    %p33 = por %p31, %p32
    %p34 = scmp.ne.s32.totalorder %s23, %s26
    %p35 = scmp.eq.s32.totalorder %s18, 3
    %p36 = por %p34, %p35
    %p37 = scmp.ne.s32.totalorder %s26, %s27
    %p38 = scmp.eq.s32.totalorder %s18, 0
    %p39 = por %p37, %p38
    %p40 = scmp.ne.s32.totalorder %s26, %s27
    %p41 = scmp.eq.s32.totalorder %s19, 3
    %p42 = por %p40, %p41
    %p44 = scmp.ne.s32.totalorder %s27, %s43
    %p45 = scmp.eq.s32.totalorder %s19, 0
    %p46 = por %p44, %p45
    %s48 = sadd.s32 %s47, 1
    %p51 = scmp.eq.s32.totalorder %s13, 3
    %p52 = scmp.ne.s32.totalorder %s47, %s49
    %p53 = scmp.eq.s32.totalorder %s13, 0
    %p54 = por %p52, %p53
    %p55 = scmp.ne.s32.totalorder %s47, %s49
    %p56 = scmp.eq.s32.totalorder %s18, 3
    %p57 = por %p55, %p56
    %p58 = scmp.ne.s32.totalorder %s49, %s50
    %p59 = scmp.eq.s32.totalorder %s18, 0
    %p60 = por %p58, %p59
    %p61 = scmp.ne.s32.totalorder %s49, %s50
    %p62 = scmp.eq.s32.totalorder %s19, 3
    %p63 = por %p61, %p62
    %p65 = scmp.ne.s32.totalorder %s50, %s64
    %p66 = scmp.eq.s32.totalorder %s19, 0
    %p67 = por %p65, %p66
    %s69 = sadd.s32 %s68, 1
    %p72 = scmp.eq.s32.totalorder %s13, 3
    %p73 = scmp.ne.s32.totalorder %s68, %s70
    %p74 = scmp.eq.s32.totalorder %s13, 0
    %p75 = por %p73, %p74
    %p76 = scmp.ne.s32.totalorder %s68, %s70
    %p77 = scmp.eq.s32.totalorder %s18, 3
    %p78 = por %p76, %p77
    %p79 = scmp.ne.s32.totalorder %s70, %s71
    %p80 = scmp.eq.s32.totalorder %s18, 0
    %p81 = por %p79, %p80
    %p82 = scmp.ne.s32.totalorder %s70, %s71
    %p83 = scmp.eq.s32.totalorder %s19, 3
    %p84 = por %p82, %p83
    %p86 = scmp.ne.s32.totalorder %s71, %s85
    %p87 = scmp.eq.s32.totalorder %s19, 0
    %p88 = por %p86, %p87
    %s90 = sadd.s32 %s89, 1
    %p93 = scmp.eq.s32.totalorder %s13, 3
    %p94 = scmp.ne.s32.totalorder %s89, %s91
    %p95 = scmp.eq.s32.totalorder %s13, 0
    %p96 = por %p94, %p95
    %p97 = scmp.ne.s32.totalorder %s89, %s91
    %p98 = scmp.eq.s32.totalorder %s18, 3
    %p99 = por %p97, %p98
    %p100 = scmp.ne.s32.totalorder %s91, %s92
    %p101 = scmp.eq.s32.totalorder %s18, 0
    %p102 = por %p100, %p101
    %p103 = scmp.ne.s32.totalorder %s91, %s92
    %p104 = scmp.eq.s32.totalorder %s19, 3
    %p105 = por %p103, %p104
    %p107 = scmp.ne.s32.totalorder %s92, %s106
    %p108 = scmp.eq.s32.totalorder %s19, 0
    %p109 = por %p107, %p108
    %s111 = sadd.s32 %s110, 1
    %p114 = scmp.eq.s32.totalorder %s13, 3
    %p115 = scmp.ne.s32.totalorder %s110, %s112
    %p116 = scmp.eq.s32.totalorder %s13, 0
    %p117 = por %p115, %p116
    %p118 = scmp.ne.s32.totalorder %s110, %s112
    %p119 = scmp.eq.s32.totalorder %s18, 3
    %p120 = por %p118, %p119
    %p121 = scmp.ne.s32.totalorder %s112, %s113
    %p122 = scmp.eq.s32.totalorder %s18, 0
    %p123 = por %p121, %p122
    %p124 = scmp.ne.s32.totalorder %s112, %s113
    %p125 = scmp.eq.s32.totalorder %s19, 3
    %p126 = por %p124, %p125
    %p128 = scmp.ne.s32.totalorder %s113, %s127
    %p129 = scmp.eq.s32.totalorder %s19, 0
    %p130 = por %p128, %p129
    %s132 = sadd.s32 %s131, 1
    %p135 = scmp.eq.s32.totalorder %s13, 3
    %p136 = scmp.ne.s32.totalorder %s131, %s133
    %p137 = scmp.eq.s32.totalorder %s13, 0
    %p138 = por %p136, %p137
    %p139 = scmp.ne.s32.totalorder %s131, %s133
    %p140 = scmp.eq.s32.totalorder %s18, 3
    %p141 = por %p139, %p140
    %p142 = scmp.ne.s32.totalorder %s133, %s134
    %p143 = scmp.eq.s32.totalorder %s18, 0
    %p144 = por %p142, %p143
    %p145 = scmp.ne.s32.totalorder %s133, %s134
    %p146 = scmp.eq.s32.totalorder %s19, 3
    %p147 = por %p145, %p146
    %p149 = scmp.ne.s32.totalorder %s134, %s148
    %p150 = scmp.eq.s32.totalorder %s19, 0
    %p151 = por %p149, %p150
    %s153 = sadd.s32 %s152, 1
    %p156 = scmp.eq.s32.totalorder %s13, 3
    %p157 = scmp.ne.s32.totalorder %s152, %s154
    %p158 = scmp.eq.s32.totalorder %s13, 0
    %p159 = por %p157, %p158
    %p160 = scmp.ne.s32.totalorder %s152, %s154
    %p161 = scmp.eq.s32.totalorder %s18, 3
    %p162 = por %p160, %p161
    %p163 = scmp.ne.s32.totalorder %s154, %s155
    %p164 = scmp.eq.s32.totalorder %s18, 0
    %p165 = por %p163, %p164
    %p166 = scmp.ne.s32.totalorder %s154, %s155
    %p167 = scmp.eq.s32.totalorder %s19, 3
    %p168 = por %p166, %p167
    %p170 = scmp.ne.s32.totalorder %s155, %s169
    %p171 = scmp.eq.s32.totalorder %s19, 0
    %p172 = por %p170, %p171
    %s173 = ssub.s32 %s13, %s20
    %p174 = scmp.eq.s32.totalorder %s173, 0
    %s176 = sadd.s32 %s175, 1
    %s177 = scalar_select %p174, %s175, %s176
    %p180 = pneg %p174
    %p181 = scmp.eq.s32.totalorder %s13, 3
    %p182 = por %p180, %p181
    %p183 = scmp.ne.s32.totalorder %s175, %s178
    %p184 = scmp.eq.s32.totalorder %s13, 0
    %p185 = por %p183, %p184
    %p186 = scmp.ne.s32.totalorder %s175, %s178
    %p187 = scmp.eq.s32.totalorder %s18, 3
    %p188 = por %p186, %p187
    %p189 = scmp.ne.s32.totalorder %s178, %s179
    %p190 = scmp.eq.s32.totalorder %s18, 0
    %p191 = por %p189, %p190
    %p192 = scmp.ne.s32.totalorder %s178, %s179
    %p193 = scmp.eq.s32.totalorder %s19, 3
    %p194 = por %p192, %p193
    %p196 = scmp.ne.s32.totalorder %s179, %s195
    %p197 = scmp.eq.s32.totalorder %s19, 0
    %p198 = por %p196, %p197
    %p199 = scmp.le.s32.totalorder 1, %s13
    %p200 = scmp.lt.s32.totalorder %s13, 5
    %p201 = pnand %p199, %p200
    %p202 = pneg %p201
    // Predicated region
    $region9: #{mlp_forward.1} parent=5 // pred_check
      _
    $region10: #{mlp_forward.1} parent=5 // pred_check_branch
      %204 = sbr.rel (%p201) target = $region12
    $region11: #{mlp_forward.1} parent=5 // pred_region
      %s205 = ssub.s32 %s13, 1
      // Predicated region
      $region13: #{mlp_forward.1} parent=11 // pred_check
        %p206 = pneg %p60
      $region14: #{mlp_forward.1} parent=11 // pred_check_branch
        %208 = sbr.rel (%p206) target = $region16
      $region15: #{mlp_forward.1} parent=11 // pred_region
        _
      $region16: #{mlp_forward.1} parent=11 // pred_fallthru
        _
      // Predicated region
      $region17: #{mlp_forward.1} parent=11 // pred_check
        %p209 = pneg %p81
      $region18: #{mlp_forward.1} parent=11 // pred_check_branch
        %211 = sbr.rel (%p209) target = $region20
      $region19: #{mlp_forward.1} parent=11 // pred_region
        _
      $region20: #{mlp_forward.1} parent=11 // pred_fallthru
        _
      // Predicated region
      $region21: #{mlp_forward.1} parent=11 // pred_check
        %p212 = pneg %p102
      $region22: #{mlp_forward.1} parent=11 // pred_check_branch
        %214 = sbr.rel (%p212) target = $region24
      $region23: #{mlp_forward.1} parent=11 // pred_region
        _
      $region24: #{mlp_forward.1} parent=11 // pred_fallthru
        _
      // Predicated region
      $region25: #{mlp_forward.1} parent=11 // pred_check
        %p215 = pneg %p123
      $region26: #{mlp_forward.1} parent=11 // pred_check_branch
        %217 = sbr.rel (%p215) target = $region28
      $region27: #{mlp_forward.1} parent=11 // pred_region
        _
      $region28: #{mlp_forward.1} parent=11 // pred_fallthru
        _
      // Predicated region
      $region29: #{mlp_forward.1} parent=11 // pred_check
        %p218 = pneg %p144
      $region30: #{mlp_forward.1} parent=11 // pred_check_branch
        %220 = sbr.rel (%p218) target = $region32
      $region31: #{mlp_forward.1} parent=11 // pred_region
        _
      $region32: #{mlp_forward.1} parent=11 // pred_fallthru
        _
      // Predicated region
      $region33: #{mlp_forward.1} parent=11 // pred_check
        %p221 = pneg %p165
      $region34: #{mlp_forward.1} parent=11 // pred_check_branch
        %223 = sbr.rel (%p221) target = $region36
      $region35: #{mlp_forward.1} parent=11 // pred_region
        _
      $region36: #{mlp_forward.1} parent=11 // pred_fallthru
        _
    $region12: #{mlp_forward.1} parent=5 // pred_fallthru
      _
    %p224 = scmp.lt.s32.totalorder %s13, 4
    // Predicated region
    $region37: #{mlp_forward.1} parent=5 // pred_check
      %p225 = pneg %p224
    $region38: #{mlp_forward.1} parent=5 // pred_check_branch
      %227 = sbr.rel (%p225) target = $region40
    $region39: #{mlp_forward.1} parent=5 // pred_region
      // Predicated region
      $region41: #{mlp_forward.1} parent=39 // pred_check
        %p228 = pneg %p33
      $region42: #{mlp_forward.1} parent=39 // pred_check_branch
        %230 = sbr.rel (%p228) target = $region44
      $region43: #{mlp_forward.1} parent=39 // pred_region
        %s231 = smul.u32 64, %s13
        %p232 = scmp.lt.s32.totalorder %s231, 255
        %s233 = scalar_select %p232, %s231, 255
        %s234 = smul.addr %s233, 8
        %s235 = scalar_lea.vmem %s0, %s234
        %s236 = smul.u32 64, %s13
      $region44: #{mlp_forward.1} parent=39 // pred_fallthru
        _
    $region40: #{mlp_forward.1} parent=5 // pred_fallthru
      _
    %p237 = scmp.le.s32.totalorder 1, %s13
    %p238 = scmp.lt.s32.totalorder %s13, 5
    %p239 = pnand %p237, %p238
    %p240 = pneg %p239
    // Predicated region
    $region45: #{mlp_forward.1} parent=5 // pred_check
      _
    $region46: #{mlp_forward.1} parent=5 // pred_check_branch
      %242 = sbr.rel (%p239) target = $region48
    $region47: #{mlp_forward.1} parent=5 // pred_region
      %s243 = ssub.s32 %s13, 1
      %s244 = smul.u32 64, %s18
      %p245 = scmp.lt.s32.totalorder %s244, 255
      %s246 = scalar_select %p245, %s244, 255
      %s247 = smul.addr %s246, 8
      %s248 = scalar_lea.vmem %s0, %s247
      %p249 = pneg %p39
      %p250 = pneg %p36
      %p251 = pneg %p60
      %p252 = pneg %p57
      %p253 = pneg %p81
      %p254 = pneg %p78
      %p255 = pneg %p102
      %p256 = pneg %p99
      %p257 = pneg %p123
      %p258 = pneg %p120
      %p259 = pneg %p144
      %p260 = pneg %p141
      %p261 = pneg %p165
      %p262 = pneg %p162
      %p263 = pneg %p191
      %p264 = pneg %p188
      %s265 = smul.u32 64, %s18
      %p266 = scmp.lt.s32.totalorder %s265, 255
      %s267 = scalar_select %p266, %s265, 255
      %s268 = smul.addr %s267, 8
      %s269 = scalar_lea.vmem %s7, %s268
      %s270 = smul.u32 64, %s18
      %p271 = scmp.lt.s32.totalorder %s270, 255
      %s272 = scalar_select %p271, %s270, 255
      %s273 = smul.addr %s272, 8
      %s274 = scalar_lea.vmem %s0, %s273
      %s275 = smul.u32 64, %s18
      %s276 = smul.u32 64, %s18
      %p277 = scmp.lt.s32.totalorder %s276, 255
      %s278 = scalar_select %p277, %s276, 255
      %s279 = smul.addr %s278, 8
      %s280 = scalar_lea.vmem %s7, %s279
      %s281 = smul.u32 64, %s18
      %v282 = vld [vmem:[%s274] sm:$0xff]
      %v283 = vld [vmem:[%s274 + $0x8] sm:$0xff]
      %v284 = vld [vmem:[%s274 + $0x10] sm:$0xff]
      %v285 = vld [vmem:[%s274 + $0x18] sm:$0xff]
      %v286 = vld [vmem:[%s274 + $0x20] sm:$0xff]
      %v287 = vld [vmem:[%s274 + $0x28] sm:$0xff]
      %v288 = vld [vmem:[%s274 + $0x30] sm:$0xff]
      %v289 = vld [vmem:[%s274 + $0x38] sm:$0xff]
      %v290 = vld [vmem:[%s274 + $0x40] sm:$0xff]
      %v291 = vld [vmem:[%s274 + $0x48] sm:$0xff]
      %v292 = vld [vmem:[%s274 + $0x50] sm:$0xff]
      %v293 = vld [vmem:[%s274 + $0x58] sm:$0xff]
      %v294 = vld [vmem:[%s274 + $0x60] sm:$0xff]
      %v295 = vld [vmem:[%s274 + $0x68] sm:$0xff]
      %v296 = vld [vmem:[%s274 + $0x70] sm:$0xff]
      %v297 = vld [vmem:[%s274 + $0x78] sm:$0xff]
      %v298 = vld [vmem:[%s274 + $0x80] sm:$0xff]
      %v299 = vld [vmem:[%s274 + $0x88] sm:$0xff]
      %v300 = vld [vmem:[%s274 + $0x90] sm:$0xff]
      %v301 = vld [vmem:[%s274 + $0x98] sm:$0xff]
      %v302 = vld [vmem:[%s274 + $0xa0] sm:$0xff]
      %v303 = vld [vmem:[%s274 + $0xa8] sm:$0xff]
      %v304 = vld [vmem:[%s274 + $0xb0] sm:$0xff]
      %v305 = vld [vmem:[%s274 + $0xb8] sm:$0xff]
      %v306 = vld [vmem:[%s274 + $0xc0] sm:$0xff]
      %v307 = vld [vmem:[%s274 + $0xc8] sm:$0xff]
      %v308 = vld [vmem:[%s274 + $0xd0] sm:$0xff]
      %v309 = vld [vmem:[%s274 + $0xd8] sm:$0xff]
      %v310 = vld [vmem:[%s274 + $0xe0] sm:$0xff]
      %v311 = vld [vmem:[%s274 + $0xe8] sm:$0xff]
      %v312 = vld [vmem:[%s274 + $0xf0] sm:$0xff]
      %v313 = vld [vmem:[%s274 + $0xf8] sm:$0xff]
      %v314 = vld [vmem:[%s274 + $0x100] sm:$0xff]
      %v315 = vld [vmem:[%s274 + $0x108] sm:$0xff]
      %v316 = vld [vmem:[%s274 + $0x110] sm:$0xff]
      %v317 = vld [vmem:[%s274 + $0x118] sm:$0xff]
      %v318 = vld [vmem:[%s274 + $0x120] sm:$0xff]
      %v319 = vld [vmem:[%s274 + $0x128] sm:$0xff]
      %v320 = vld [vmem:[%s274 + $0x130] sm:$0xff]
      %v321 = vld [vmem:[%s274 + $0x138] sm:$0xff]
      %v322 = vld [vmem:[%s274 + $0x140] sm:$0xff]
      %v323 = vld [vmem:[%s274 + $0x148] sm:$0xff]
      %v324 = vld [vmem:[%s274 + $0x150] sm:$0xff]
      %v325 = vld [vmem:[%s274 + $0x158] sm:$0xff]
      %v326 = vld [vmem:[%s274 + $0x160] sm:$0xff]
      %v327 = vld [vmem:[%s274 + $0x168] sm:$0xff]
      %v328 = vld [vmem:[%s274 + $0x170] sm:$0xff]
      %v329 = vld [vmem:[%s274 + $0x178] sm:$0xff]
      %v330 = vld [vmem:[%s274 + $0x180] sm:$0xff]
      %v331 = vld [vmem:[%s274 + $0x188] sm:$0xff]
      %v332 = vld [vmem:[%s274 + $0x190] sm:$0xff]
      %v333 = vld [vmem:[%s274 + $0x198] sm:$0xff]
      %v334 = vld [vmem:[%s274 + $0x1a0] sm:$0xff]
      %v335 = vld [vmem:[%s274 + $0x1a8] sm:$0xff]
      %v336 = vld [vmem:[%s274 + $0x1b0] sm:$0xff]
      %v337 = vld [vmem:[%s274 + $0x1b8] sm:$0xff]
      %v338 = vld [vmem:[%s274 + $0x1c0] sm:$0xff]
      %v339 = vld [vmem:[%s274 + $0x1c8] sm:$0xff]
      %v340 = vld [vmem:[%s274 + $0x1d0] sm:$0xff]
      %v341 = vld [vmem:[%s274 + $0x1d8] sm:$0xff]
      %v342 = vld [vmem:[%s274 + $0x1e0] sm:$0xff]
      %v343 = vld [vmem:[%s274 + $0x1e8] sm:$0xff]
      %v344 = vld [vmem:[%s274 + $0x1f0] sm:$0xff]
      %v345 = vld [vmem:[%s274 + $0x1f8] sm:$0xff]
      %v346 = vld [vmem:[%s1] sm:$0xff]
      %v347 = vld [vmem:[%s1 + $0x8] sm:$0xff]
      %v348 = vld [vmem:[%s1 + $0x10] sm:$0xff]
      %v349 = vld [vmem:[%s1 + $0x18] sm:$0xff]
      %v350 = vld [vmem:[%s2] sm:$0xff]
      %v351 = vld [vmem:[%s2 + $0x8] sm:$0xff]
      %v352 = vld [vmem:[%s2 + $0x10] sm:$0xff]
      %v353 = vld [vmem:[%s2 + $0x18] sm:$0xff]
      %355 = vset.pattern.permute.xlu0 0
      %356 = vperm.xlu0 %355, %v350
      %v357 = vpop.permute.xlu0 %356
      %360 = vset.pattern.permute.xlu0 0
      %361 = vperm.xlu0 %360, %v351
      %v362 = vpop.permute.xlu0 %361
      %365 = vset.pattern.permute.xlu0 0
      %366 = vperm.xlu0 %365, %v352
      %v367 = vpop.permute.xlu0 %366
      %370 = vset.pattern.permute.xlu0 0
      %371 = vperm.xlu0 %370, %v353
      %v372 = vpop.permute.xlu0 %371
      %vm374 = vcmask 130048
      %v376 = vsel %vm374, %v346, 0
      %v379 = vsel %vm374, %v347, 0
      %v382 = vsel %vm374, %v348, 0
      %v385 = vsel %vm374, %v349, 0
      %v388 = vsel %vm374, %v282, 0
      %v391 = vsel %vm374, %v283, 0
      %v394 = vsel %vm374, %v284, 0
      %v397 = vsel %vm374, %v285, 0
      %v400 = vsel %vm374, %v286, 0
      %v403 = vsel %vm374, %v287, 0
      %v406 = vsel %vm374, %v288, 0
      %v409 = vsel %vm374, %v289, 0
      %v412 = vsel %vm374, %v290, 0
      %v415 = vsel %vm374, %v291, 0
      %v418 = vsel %vm374, %v292, 0
      %v421 = vsel %vm374, %v293, 0
      %v424 = vsel %vm374, %v294, 0
      %v427 = vsel %vm374, %v295, 0
      %v430 = vsel %vm374, %v296, 0
      %v433 = vsel %vm374, %v297, 0
      %v436 = vsel %vm374, %v298, 0
      %v439 = vsel %vm374, %v299, 0
      %v442 = vsel %vm374, %v300, 0
      %v445 = vsel %vm374, %v301, 0
      %v448 = vsel %vm374, %v302, 0
      %v451 = vsel %vm374, %v303, 0
      %v454 = vsel %vm374, %v304, 0
      %v457 = vsel %vm374, %v305, 0
      %v460 = vsel %vm374, %v306, 0
      %v463 = vsel %vm374, %v307, 0
      %v466 = vsel %vm374, %v308, 0
      %v469 = vsel %vm374, %v309, 0
      %v472 = vsel %vm374, %v310, 0
      %v475 = vsel %vm374, %v311, 0
      %v478 = vsel %vm374, %v312, 0
      %v481 = vsel %vm374, %v313, 0
      %v484 = vsel %vm374, %v314, 0
      %v487 = vsel %vm374, %v315, 0
      %v490 = vsel %vm374, %v316, 0
      %v493 = vsel %vm374, %v317, 0
      %v496 = vsel %vm374, %v318, 0
      %v499 = vsel %vm374, %v319, 0
      %v502 = vsel %vm374, %v320, 0
      %v505 = vsel %vm374, %v321, 0
      %v508 = vsel %vm374, %v322, 0
      %v511 = vsel %vm374, %v323, 0
      %v514 = vsel %vm374, %v324, 0
      %v517 = vsel %vm374, %v325, 0
      %v520 = vsel %vm374, %v326, 0
      %v523 = vsel %vm374, %v327, 0
      %v526 = vsel %vm374, %v328, 0
      %v529 = vsel %vm374, %v329, 0
      %v532 = vsel %vm374, %v330, 0
      %v535 = vsel %vm374, %v331, 0
      %v538 = vsel %vm374, %v332, 0
      %v541 = vsel %vm374, %v333, 0
      %v544 = vsel %vm374, %v334, 0
      %v547 = vsel %vm374, %v335, 0
      %v550 = vsel %vm374, %v336, 0
      %v553 = vsel %vm374, %v337, 0
      %v556 = vsel %vm374, %v338, 0
      %v559 = vsel %vm374, %v339, 0
      %v562 = vsel %vm374, %v340, 0
      %v565 = vsel %vm374, %v341, 0
      %v568 = vsel %vm374, %v342, 0
      %v571 = vsel %vm374, %v343, 0
      %v574 = vsel %vm374, %v344, 0
      %v577 = vsel %vm374, %v345, 0
      %579 = vmatprep.subr.mxu0 0.0
      %580 = vmatpush1.xpose.msra.mxu0 %v388
      %581 = vmatprep.subr.mxu0 0.0
      %582 = vmatpush1.xpose.msra.mxu0 %v391
      %583 = vmatprep.subr.mxu0 0.0
      %584 = vmatpush1.xpose.msra.mxu0 %v394
      %585 = vmatprep.subr.mxu0 0.0
      %586 = vmatpush1.xpose.msra.mxu0 %v397
      %587 = vmatprep.subr.mxu0 0.0
      %588 = vmatpush1.xpose.msra.mxu0 %v400
      %589 = vmatprep.subr.mxu0 0.0
      %590 = vmatpush1.xpose.msra.mxu0 %v403
      %591 = vmatprep.subr.mxu0 0.0
      %592 = vmatpush1.xpose.msra.mxu0 %v406
      %593 = vmatprep.subr.mxu0 0.0
      %594 = vmatpush1.xpose.msra.mxu0 %v409
      %595 = vmatprep.subr.mxu0 0.0
      %596 = vmatpush1.xpose.msra.mxu0 %v412
      %597 = vmatprep.subr.mxu0 0.0
      %598 = vmatpush1.xpose.msra.mxu0 %v415
      %599 = vmatprep.subr.mxu0 0.0
      %600 = vmatpush1.xpose.msra.mxu0 %v418
      %601 = vmatprep.subr.mxu0 0.0
      %602 = vmatpush1.xpose.msra.mxu0 %v421
      %603 = vmatprep.subr.mxu0 0.0
      %604 = vmatpush1.xpose.msra.mxu0 %v424
      %605 = vmatprep.subr.mxu0 0.0
      %606 = vmatpush1.xpose.msra.mxu0 %v427
      %607 = vmatprep.subr.mxu0 0.0
      %608 = vmatpush1.xpose.msra.mxu0 %v430
      %609 = vmatprep.subr.mxu0 0.0
      %610 = vmatpush1.xpose.msra.mxu0 %v433
      %611 = vmatprep.subr.mxu0 0.0
      %612 = vmatpush1.xpose.msra.mxu0 %v436
      %613 = vmatprep.subr.mxu0 0.0
      %614 = vmatpush1.xpose.msra.mxu0 %v439
      %615 = vmatprep.subr.mxu0 0.0
      %616 = vmatpush1.xpose.msra.mxu0 %v442
      %617 = vmatprep.subr.mxu0 0.0
      %618 = vmatpush1.xpose.msra.mxu0 %v445
      %619 = vmatprep.subr.mxu0 0.0
      %620 = vmatpush1.xpose.msra.mxu0 %v448
      %621 = vmatprep.subr.mxu0 0.0
      %622 = vmatpush1.xpose.msra.mxu0 %v451
      %623 = vmatprep.subr.mxu0 0.0
      %624 = vmatpush1.xpose.msra.mxu0 %v454
      %625 = vmatprep.subr.mxu0 0.0
      %626 = vmatpush1.xpose.msra.mxu0 %v457
      %627 = vmatprep.subr.mxu0 0.0
      %628 = vmatpush1.xpose.msra.mxu0 %v460
      %629 = vmatprep.subr.mxu0 0.0
      %630 = vmatpush1.xpose.msra.mxu0 %v463
      %631 = vmatprep.subr.mxu0 0.0
      %632 = vmatpush1.xpose.msra.mxu0 %v466
      %633 = vmatprep.subr.mxu0 0.0
      %634 = vmatpush1.xpose.msra.mxu0 %v469
      %635 = vmatprep.subr.mxu0 0.0
      %636 = vmatpush1.xpose.msra.mxu0 %v472
      %637 = vmatprep.subr.mxu0 0.0
      %638 = vmatpush1.xpose.msra.mxu0 %v475
      %639 = vmatprep.subr.mxu0 0.0
      %640 = vmatpush1.xpose.msra.mxu0 %v478
      %641 = vmatprep.subr.mxu0 0.0
      %642 = vmatpush1.xpose.msra.mxu0 %v481
      %643 = vmatprep.mubr.f32.mxu0 0.0
      %644 = vmatmul.mubr.f32.gmra.mrb[0].mxu0 %v376
      %v645 = vpop.f32.mrb[0].mxu0
      %v646 = vadd.f32 %v357, %v645
      %v647 = vpop.f32.mrb[0].mxu0
      %v648 = vadd.f32 %v357, %v647
      %649 = vmatprep.mubr.f32.mxu0 0.0
      %650 = vmatmul.mubr.f32.gmra.mrb[0].mxu0 %v379
      %v651 = vpop.f32.mrb[0].mxu0
      %v652 = vadd.f32 %v362, %v651
      %v653 = vpop.f32.mrb[0].mxu0
      %v654 = vadd.f32 %v362, %v653
      %655 = vmatprep.mubr.f32.mxu0 0.0
      %656 = vmatmul.mubr.f32.gmra.mrb[0].mxu0 %v382
      %v657 = vpop.f32.mrb[0].mxu0
      %v658 = vadd.f32 %v367, %v657
      %v659 = vpop.f32.mrb[0].mxu0
      %v660 = vadd.f32 %v367, %v659
      %661 = vmatprep.mubr.f32.mxu0 0.0
      %662 = vmatmul.mubr.f32.gmra.mrb[0].mxu0 %v385
      %v663 = vpop.f32.mrb[0].mxu0
      %v664 = vadd.f32 %v372, %v663
      %v665 = vpop.f32.mrb[0].mxu0
      %v666 = vadd.f32 %v372, %v665
      %667 = vdwg.mxu0
      %668 = vmatprep.subr.mxu0 0.0
      %669 = vmatpush1.xpose.msra.mxu0 %v484
      %670 = vmatprep.subr.mxu0 0.0
      %671 = vmatpush1.xpose.msra.mxu0 %v487
      %672 = vmatprep.subr.mxu0 0.0
      %673 = vmatpush1.xpose.msra.mxu0 %v490
      %674 = vmatprep.subr.mxu0 0.0
      %675 = vmatpush1.xpose.msra.mxu0 %v493
      %676 = vmatprep.subr.mxu0 0.0
      %677 = vmatpush1.xpose.msra.mxu0 %v496
      %678 = vmatprep.subr.mxu0 0.0
      %679 = vmatpush1.xpose.msra.mxu0 %v499
      %680 = vmatprep.subr.mxu0 0.0
      %681 = vmatpush1.xpose.msra.mxu0 %v502
      %682 = vmatprep.subr.mxu0 0.0
      %683 = vmatpush1.xpose.msra.mxu0 %v505
      %684 = vmatprep.subr.mxu0 0.0
      %685 = vmatpush1.xpose.msra.mxu0 %v508
      %686 = vmatprep.subr.mxu0 0.0
      %687 = vmatpush1.xpose.msra.mxu0 %v511
      %688 = vmatprep.subr.mxu0 0.0
      %689 = vmatpush1.xpose.msra.mxu0 %v514
      %690 = vmatprep.subr.mxu0 0.0
      %691 = vmatpush1.xpose.msra.mxu0 %v517
      %692 = vmatprep.subr.mxu0 0.0
      %693 = vmatpush1.xpose.msra.mxu0 %v520
      %694 = vmatprep.subr.mxu0 0.0
      %695 = vmatpush1.xpose.msra.mxu0 %v523
      %696 = vmatprep.subr.mxu0 0.0
      %697 = vmatpush1.xpose.msra.mxu0 %v526
      %698 = vmatprep.subr.mxu0 0.0
      %699 = vmatpush1.xpose.msra.mxu0 %v529
      %700 = vmatprep.subr.mxu0 0.0
      %701 = vmatpush1.xpose.msra.mxu0 %v532
      %702 = vmatprep.subr.mxu0 0.0
      %703 = vmatpush1.xpose.msra.mxu0 %v535
      %704 = vmatprep.subr.mxu0 0.0
      %705 = vmatpush1.xpose.msra.mxu0 %v538
      %706 = vmatprep.subr.mxu0 0.0
      %707 = vmatpush1.xpose.msra.mxu0 %v541
      %708 = vmatprep.subr.mxu0 0.0
      %709 = vmatpush1.xpose.msra.mxu0 %v544
      %710 = vmatprep.subr.mxu0 0.0
      %711 = vmatpush1.xpose.msra.mxu0 %v547
      %712 = vmatprep.subr.mxu0 0.0
      %713 = vmatpush1.xpose.msra.mxu0 %v550
      %714 = vmatprep.subr.mxu0 0.0
      %715 = vmatpush1.xpose.msra.mxu0 %v553
      %716 = vmatprep.subr.mxu0 0.0
      %717 = vmatpush1.xpose.msra.mxu0 %v556
      %718 = vmatprep.subr.mxu0 0.0
      %719 = vmatpush1.xpose.msra.mxu0 %v559
      %720 = vmatprep.subr.mxu0 0.0
      %721 = vmatpush1.xpose.msra.mxu0 %v562
      %722 = vmatprep.subr.mxu0 0.0
      %723 = vmatpush1.xpose.msra.mxu0 %v565
      %724 = vmatprep.subr.mxu0 0.0
      %725 = vmatpush1.xpose.msra.mxu0 %v568
      %726 = vmatprep.subr.mxu0 0.0
      %727 = vmatpush1.xpose.msra.mxu0 %v571
      %728 = vmatprep.subr.mxu0 0.0
      %729 = vmatpush1.xpose.msra.mxu0 %v574
      %730 = vmatprep.subr.mxu0 0.0
      %731 = vmatpush1.xpose.msra.mxu0 %v577
      %732 = vmatprep.mubr.f32.mxu0 0.0
      %733 = vmatmul.mubr.f32.gmra.mrb[0].mxu0 %v376
      %v734 = vpop.f32.mrb[0].mxu0
      %v735 = vadd.f32 %v357, %v734
      %v736 = vpop.f32.mrb[0].mxu0
      %v737 = vadd.f32 %v357, %v736
      %738 = vmatprep.mubr.f32.mxu0 0.0
      %739 = vmatmul.mubr.f32.gmra.mrb[0].mxu0 %v379
      %v740 = vpop.f32.mrb[0].mxu0
      %v741 = vadd.f32 %v362, %v740
      %v742 = vpop.f32.mrb[0].mxu0
      %v743 = vadd.f32 %v362, %v742
      %744 = vmatprep.mubr.f32.mxu0 0.0
      %745 = vmatmul.mubr.f32.gmra.mrb[0].mxu0 %v382
      %v746 = vpop.f32.mrb[0].mxu0
      %v747 = vadd.f32 %v367, %v746
      %v748 = vpop.f32.mrb[0].mxu0
      %v749 = vadd.f32 %v367, %v748
      %750 = vmatprep.mubr.f32.mxu0 0.0
      %751 = vmatmul.mubr.f32.gmra.mrb[0].mxu0 %v385
      %v752 = vpop.f32.mrb[0].mxu0
      %v753 = vadd.f32 %v372, %v752
      %v754 = vpop.f32.mrb[0].mxu0
      %v755 = vadd.f32 %v372, %v754
      %756 = vdwg.mxu0
      %v757 = vmax.f32 %v646, 0.0
      %v758 = vmax.f32 %v648, 0.0
      %v759 = vmax.f32 %v735, 0.0
      %v760 = vmax.f32 %v737, 0.0
      %v761 = vmax.f32 %v652, 0.0
      %v762 = vmax.f32 %v654, 0.0
      %v763 = vmax.f32 %v741, 0.0
      %v764 = vmax.f32 %v743, 0.0
      %v765 = vmax.f32 %v658, 0.0
      %v766 = vmax.f32 %v660, 0.0
      %v767 = vmax.f32 %v747, 0.0
      %v768 = vmax.f32 %v749, 0.0
      %v769 = vmax.f32 %v664, 0.0
      %v770 = vmax.f32 %v666, 0.0
      %v771 = vmax.f32 %v753, 0.0
      %v772 = vmax.f32 %v755, 0.0
      %v773 = vld [vmem:[%s3] sm:$0xff]
      %v774 = vld [vmem:[%s3 + $0x8] sm:$0xff]
      %v775 = vld [vmem:[%s3 + $0x10] sm:$0xff]
      %v776 = vld [vmem:[%s3 + $0x18] sm:$0xff]
      %v777 = vld [vmem:[%s4] sm:$0xff]
      %v778 = vld [vmem:[%s4 + $0x8] sm:$0xff]
      %v779 = vld [vmem:[%s4 + $0x10] sm:$0xff]
      %v780 = vld [vmem:[%s4 + $0x18] sm:$0xff]
      %782 = vset.pattern.permute.xlu0 0
      %783 = vperm.xlu0 %782, %v777
      %v784 = vpop.permute.xlu0 %783
      %787 = vset.pattern.permute.xlu0 0
      %788 = vperm.xlu0 %787, %v778
      %v789 = vpop.permute.xlu0 %788
      %792 = vset.pattern.permute.xlu0 0
      %793 = vperm.xlu0 %792, %v779
      %v794 = vpop.permute.xlu0 %793
      %797 = vset.pattern.permute.xlu0 0
      %798 = vperm.xlu0 %797, %v780
      %v799 = vpop.permute.xlu0 %798
      %vm801 = vcmask 261120
      %v803 = vsel %vm801, %v773, 0
      %v806 = vsel %vm801, %v774, 0
      %v809 = vsel %vm801, %v775, 0
      %v812 = vsel %vm801, %v776, 0
      %814 = vmatprep.subr.mxu0 %v758
      %815 = vmatpush1.msra.mxu0 %v757
      %816 = vmatprep.subr.mxu0 %v762
      %817 = vmatpush1.msra.mxu0 %v761
      %818 = vmatprep.subr.mxu0 %v766
      %819 = vmatpush1.msra.mxu0 %v765
      %820 = vmatprep.subr.mxu0 %v770
      %821 = vmatpush1.msra.mxu0 %v769
      %822 = vmatprep.subr.mxu0 0.0
      %823 = vmatpush1.msra.mxu0 0.0
      %824 = vmatprep.subr.mxu0 0.0
      %825 = vmatpush1.msra.mxu0 0.0
      %826 = vmatprep.subr.mxu0 0.0
      %827 = vmatpush1.msra.mxu0 0.0
      %828 = vmatprep.subr.mxu0 0.0
      %829 = vmatpush1.msra.mxu0 0.0
      %830 = vmatprep.subr.mxu0 0.0
      %831 = vmatpush1.msra.mxu0 0.0
      %832 = vmatprep.subr.mxu0 0.0
      %833 = vmatpush1.msra.mxu0 0.0
      %834 = vmatprep.subr.mxu0 0.0
      %835 = vmatpush1.msra.mxu0 0.0
      %836 = vmatprep.subr.mxu0 0.0
      %837 = vmatpush1.msra.mxu0 0.0
      %838 = vmatprep.subr.mxu0 0.0
      %839 = vmatpush1.msra.mxu0 0.0
      %840 = vmatprep.subr.mxu0 0.0
      %841 = vmatpush1.msra.mxu0 0.0
      %842 = vmatprep.subr.mxu0 0.0
      %843 = vmatpush1.msra.mxu0 0.0
      %844 = vmatprep.subr.mxu0 0.0
      %845 = vmatpush1.msra.mxu0 0.0
      %846 = vmatprep.subr.mxu0 0.0
      %847 = vmatpush1.msra.mxu0 0.0
      %848 = vmatprep.subr.mxu0 0.0
      %849 = vmatpush1.msra.mxu0 0.0
      %850 = vmatprep.subr.mxu0 0.0
      %851 = vmatpush1.msra.mxu0 0.0
      %852 = vmatprep.subr.mxu0 0.0
      %853 = vmatpush1.msra.mxu0 0.0
      %854 = vmatprep.subr.mxu0 0.0
      %855 = vmatpush1.msra.mxu0 0.0
      %856 = vmatprep.subr.mxu0 0.0
      %857 = vmatpush1.msra.mxu0 0.0
      %858 = vmatprep.subr.mxu0 0.0
      %859 = vmatpush1.msra.mxu0 0.0
      %860 = vmatprep.subr.mxu0 0.0
      %861 = vmatpush1.msra.mxu0 0.0
      %862 = vmatprep.subr.mxu0 0.0
      %863 = vmatpush1.msra.mxu0 0.0
      %864 = vmatprep.subr.mxu0 0.0
      %865 = vmatpush1.msra.mxu0 0.0
      %866 = vmatprep.subr.mxu0 0.0
      %867 = vmatpush1.msra.mxu0 0.0
      %868 = vmatprep.subr.mxu0 0.0
      %869 = vmatpush1.msra.mxu0 0.0
      %870 = vmatprep.subr.mxu0 0.0
      %871 = vmatpush1.msra.mxu0 0.0
      %872 = vmatprep.subr.mxu0 0.0
      %873 = vmatpush1.msra.mxu0 0.0
      %874 = vmatprep.subr.mxu0 0.0
      %875 = vmatpush1.msra.mxu0 0.0
      %876 = vmatprep.subr.mxu0 0.0
      %877 = vmatpush1.msra.mxu0 0.0
      %878 = vmatprep.mubr.f32.mxu0 0.0
      %879 = vmatmul.mubr.f32.gmra.mrb[0].mxu0 %v803
      %v880 = vpop.f32.mrb[0].mxu0
      %v881 = vadd.f32 %v784, %v880
      %v882 = vpop.f32.mrb[0].mxu0
      %v883 = vadd.f32 %v784, %v882
      %884 = vmatprep.mubr.f32.mxu0 0.0
      %885 = vmatmul.mubr.f32.gmra.mrb[0].mxu0 %v806
      %v886 = vpop.f32.mrb[0].mxu0
      %v887 = vadd.f32 %v789, %v886
      %v888 = vpop.f32.mrb[0].mxu0
      %v889 = vadd.f32 %v789, %v888
      %890 = vmatprep.mubr.f32.mxu0 0.0
      %891 = vmatmul.mubr.f32.gmra.mrb[0].mxu0 %v809
      %v892 = vpop.f32.mrb[0].mxu0
      %v893 = vadd.f32 %v794, %v892
      %v894 = vpop.f32.mrb[0].mxu0
      %v895 = vadd.f32 %v794, %v894
      %896 = vmatprep.mubr.f32.mxu0 0.0
      %897 = vmatmul.mubr.f32.gmra.mrb[0].mxu0 %v812
      %v898 = vpop.f32.mrb[0].mxu0
      %v899 = vadd.f32 %v799, %v898
      %v900 = vpop.f32.mrb[0].mxu0
      %v901 = vadd.f32 %v799, %v900
      %902 = vdwg.mxu0
      %903 = vmatprep.subr.mxu0 %v760
      %904 = vmatpush1.msra.mxu0 %v759
      %905 = vmatprep.subr.mxu0 %v764
      %906 = vmatpush1.msra.mxu0 %v763
      %907 = vmatprep.subr.mxu0 %v768
      %908 = vmatpush1.msra.mxu0 %v767
      %909 = vmatprep.subr.mxu0 %v772
      %910 = vmatpush1.msra.mxu0 %v771
      %911 = vmatprep.subr.mxu0 0.0
      %912 = vmatpush1.msra.mxu0 0.0
      %913 = vmatprep.subr.mxu0 0.0
      %914 = vmatpush1.msra.mxu0 0.0
      %915 = vmatprep.subr.mxu0 0.0
      %916 = vmatpush1.msra.mxu0 0.0
      %917 = vmatprep.subr.mxu0 0.0
      %918 = vmatpush1.msra.mxu0 0.0
      %919 = vmatprep.subr.mxu0 0.0
      %920 = vmatpush1.msra.mxu0 0.0
      %921 = vmatprep.subr.mxu0 0.0
      %922 = vmatpush1.msra.mxu0 0.0
      %923 = vmatprep.subr.mxu0 0.0
      %924 = vmatpush1.msra.mxu0 0.0
      %925 = vmatprep.subr.mxu0 0.0
      %926 = vmatpush1.msra.mxu0 0.0
      %927 = vmatprep.subr.mxu0 0.0
      %928 = vmatpush1.msra.mxu0 0.0
      %929 = vmatprep.subr.mxu0 0.0
      %930 = vmatpush1.msra.mxu0 0.0
      %931 = vmatprep.subr.mxu0 0.0
      %932 = vmatpush1.msra.mxu0 0.0
      %933 = vmatprep.subr.mxu0 0.0
      %934 = vmatpush1.msra.mxu0 0.0
      %935 = vmatprep.subr.mxu0 0.0
      %936 = vmatpush1.msra.mxu0 0.0
      %937 = vmatprep.subr.mxu0 0.0
      %938 = vmatpush1.msra.mxu0 0.0
      %939 = vmatprep.subr.mxu0 0.0
      %940 = vmatpush1.msra.mxu0 0.0
      %941 = vmatprep.subr.mxu0 0.0
      %942 = vmatpush1.msra.mxu0 0.0
      %943 = vmatprep.subr.mxu0 0.0
      %944 = vmatpush1.msra.mxu0 0.0
      %945 = vmatprep.subr.mxu0 0.0
      %946 = vmatpush1.msra.mxu0 0.0
      %947 = vmatprep.subr.mxu0 0.0
      %948 = vmatpush1.msra.mxu0 0.0
      %949 = vmatprep.subr.mxu0 0.0
      %950 = vmatpush1.msra.mxu0 0.0
      %951 = vmatprep.subr.mxu0 0.0
      %952 = vmatpush1.msra.mxu0 0.0
      %953 = vmatprep.subr.mxu0 0.0
      %954 = vmatpush1.msra.mxu0 0.0
      %955 = vmatprep.subr.mxu0 0.0
      %956 = vmatpush1.msra.mxu0 0.0
      %957 = vmatprep.subr.mxu0 0.0
      %958 = vmatpush1.msra.mxu0 0.0
      %959 = vmatprep.subr.mxu0 0.0
      %960 = vmatpush1.msra.mxu0 0.0
      %961 = vmatprep.subr.mxu0 0.0
      %962 = vmatpush1.msra.mxu0 0.0
      %963 = vmatprep.subr.mxu0 0.0
      %964 = vmatpush1.msra.mxu0 0.0
      %965 = vmatprep.subr.mxu0 0.0
      %966 = vmatpush1.msra.mxu0 0.0
      %967 = vmatprep.mubr.f32.mxu0 0.0
      %968 = vmatmul.mubr.f32.gmra.mrb[0].mxu0 %v803
      %v969 = vpop.f32.mrb[0].mxu0
      %v970 = vadd.f32 %v784, %v969
      %v971 = vpop.f32.mrb[0].mxu0
      %v972 = vadd.f32 %v784, %v971
      %973 = vmatprep.mubr.f32.mxu0 0.0
      %974 = vmatmul.mubr.f32.gmra.mrb[0].mxu0 %v806
      %v975 = vpop.f32.mrb[0].mxu0
      %v976 = vadd.f32 %v789, %v975
      %v977 = vpop.f32.mrb[0].mxu0
      %v978 = vadd.f32 %v789, %v977
      %979 = vmatprep.mubr.f32.mxu0 0.0
      %980 = vmatmul.mubr.f32.gmra.mrb[0].mxu0 %v809
      %v981 = vpop.f32.mrb[0].mxu0
      %v982 = vadd.f32 %v794, %v981
      %v983 = vpop.f32.mrb[0].mxu0
      %v984 = vadd.f32 %v794, %v983
      %985 = vmatprep.mubr.f32.mxu0 0.0
      %986 = vmatmul.mubr.f32.gmra.mrb[0].mxu0 %v812
      %v987 = vpop.f32.mrb[0].mxu0
      %v988 = vadd.f32 %v799, %v987
      %v989 = vpop.f32.mrb[0].mxu0
      %v990 = vadd.f32 %v799, %v989
      %991 = vdwg.mxu0
      %v992 = vmax.f32 %v881, 0.0
      %v993 = vmax.f32 %v883, 0.0
      %v994 = vmax.f32 %v970, 0.0
      %v995 = vmax.f32 %v972, 0.0
      %v996 = vmax.f32 %v887, 0.0
      %v997 = vmax.f32 %v889, 0.0
      %v998 = vmax.f32 %v976, 0.0
      %v999 = vmax.f32 %v978, 0.0
      %v1000 = vmax.f32 %v893, 0.0
      %v1001 = vmax.f32 %v895, 0.0
      %v1002 = vmax.f32 %v982, 0.0
      %v1003 = vmax.f32 %v984, 0.0
      %v1004 = vmax.f32 %v899, 0.0
      %v1005 = vmax.f32 %v901, 0.0
      %v1006 = vmax.f32 %v988, 0.0
      %v1007 = vmax.f32 %v990, 0.0
      %v1008 = vld [vmem:[%s5] sm:$0xff]
      %v1009 = vld [vmem:[%s6] sm:$0xff]
      %1011 = vset.pattern.permute.xlu0 0
      %1012 = vperm.xlu0 %1011, %v1009
      %v1013 = vpop.permute.xlu0 %1012
      %v1016 = vsel %vm801, %v1008, 0
      %1018 = vmatprep.subr.mxu0 %v993
      %1019 = vmatpush1.msra.mxu0 %v992
      %1020 = vmatprep.subr.mxu0 %v997
      %1021 = vmatpush1.msra.mxu0 %v996
      %1022 = vmatprep.subr.mxu0 %v1001
      %1023 = vmatpush1.msra.mxu0 %v1000
      %1024 = vmatprep.subr.mxu0 %v1005
      %1025 = vmatpush1.msra.mxu0 %v1004
      %1026 = vmatprep.subr.mxu0 0.0
      %1027 = vmatpush1.msra.mxu0 0.0
      %1028 = vmatprep.subr.mxu0 0.0
      %1029 = vmatpush1.msra.mxu0 0.0
      %1030 = vmatprep.subr.mxu0 0.0
      %1031 = vmatpush1.msra.mxu0 0.0
      %1032 = vmatprep.subr.mxu0 0.0
      %1033 = vmatpush1.msra.mxu0 0.0
      %1034 = vmatprep.subr.mxu0 0.0
      %1035 = vmatpush1.msra.mxu0 0.0
      %1036 = vmatprep.subr.mxu0 0.0
      %1037 = vmatpush1.msra.mxu0 0.0
      %1038 = vmatprep.subr.mxu0 0.0
      %1039 = vmatpush1.msra.mxu0 0.0
      %1040 = vmatprep.subr.mxu0 0.0
      %1041 = vmatpush1.msra.mxu0 0.0
      %1042 = vmatprep.subr.mxu0 0.0
      %1043 = vmatpush1.msra.mxu0 0.0
      %1044 = vmatprep.subr.mxu0 0.0
      %1045 = vmatpush1.msra.mxu0 0.0
      %1046 = vmatprep.subr.mxu0 0.0
      %1047 = vmatpush1.msra.mxu0 0.0
      %1048 = vmatprep.subr.mxu0 0.0
      %1049 = vmatpush1.msra.mxu0 0.0
      %1050 = vmatprep.subr.mxu0 0.0
      %1051 = vmatpush1.msra.mxu0 0.0
      %1052 = vmatprep.subr.mxu0 0.0
      %1053 = vmatpush1.msra.mxu0 0.0
      %1054 = vmatprep.subr.mxu0 0.0
      %1055 = vmatpush1.msra.mxu0 0.0
      %1056 = vmatprep.subr.mxu0 0.0
      %1057 = vmatpush1.msra.mxu0 0.0
      %1058 = vmatprep.subr.mxu0 0.0
      %1059 = vmatpush1.msra.mxu0 0.0
      %1060 = vmatprep.subr.mxu0 0.0
      %1061 = vmatpush1.msra.mxu0 0.0
      %1062 = vmatprep.subr.mxu0 0.0
      %1063 = vmatpush1.msra.mxu0 0.0
      %1064 = vmatprep.subr.mxu0 0.0
      %1065 = vmatpush1.msra.mxu0 0.0
      %1066 = vmatprep.subr.mxu0 0.0
      %1067 = vmatpush1.msra.mxu0 0.0
      %1068 = vmatprep.subr.mxu0 0.0
      %1069 = vmatpush1.msra.mxu0 0.0
      %1070 = vmatprep.subr.mxu0 0.0
      %1071 = vmatpush1.msra.mxu0 0.0
      %1072 = vmatprep.subr.mxu0 0.0
      %1073 = vmatpush1.msra.mxu0 0.0
      %1074 = vmatprep.subr.mxu0 0.0
      %1075 = vmatpush1.msra.mxu0 0.0
      %1076 = vmatprep.subr.mxu0 0.0
      %1077 = vmatpush1.msra.mxu0 0.0
      %1078 = vmatprep.subr.mxu0 0.0
      %1079 = vmatpush1.msra.mxu0 0.0
      %1080 = vmatprep.subr.mxu0 0.0
      %1081 = vmatpush1.msra.mxu0 0.0
      %1082 = vmatprep.mubr.f32.mxu0 0.0
      %1083 = vmatmul.mubr.f32.gmra.mrb[0].mxu0 %v1016
      %v1084 = vpop.f32.mrb[0].mxu0
      %v1085 = vadd.f32 %v1013, %v1084
      %v1086 = vpop.f32.mrb[0].mxu0
      %v1087 = vadd.f32 %v1013, %v1086
      %1088 = vdwg.mxu0
      %1089 = vmatprep.subr.mxu0 %v995
      %1090 = vmatpush1.msra.mxu0 %v994
      %1091 = vmatprep.subr.mxu0 %v999
      %1092 = vmatpush1.msra.mxu0 %v998
      %1093 = vmatprep.subr.mxu0 %v1003
      %1094 = vmatpush1.msra.mxu0 %v1002
      %1095 = vmatprep.subr.mxu0 %v1007
      %1096 = vmatpush1.msra.mxu0 %v1006
      %1097 = vmatprep.subr.mxu0 0.0
      %1098 = vmatpush1.msra.mxu0 0.0
      %1099 = vmatprep.subr.mxu0 0.0
      %1100 = vmatpush1.msra.mxu0 0.0
      %1101 = vmatprep.subr.mxu0 0.0
      %1102 = vmatpush1.msra.mxu0 0.0
      %1103 = vmatprep.subr.mxu0 0.0
      %1104 = vmatpush1.msra.mxu0 0.0
      %1105 = vmatprep.subr.mxu0 0.0
      %1106 = vmatpush1.msra.mxu0 0.0
      %1107 = vmatprep.subr.mxu0 0.0
      %1108 = vmatpush1.msra.mxu0 0.0
      %1109 = vmatprep.subr.mxu0 0.0
      %1110 = vmatpush1.msra.mxu0 0.0
      %1111 = vmatprep.subr.mxu0 0.0
      %1112 = vmatpush1.msra.mxu0 0.0
      %1113 = vmatprep.subr.mxu0 0.0
      %1114 = vmatpush1.msra.mxu0 0.0
      %1115 = vmatprep.subr.mxu0 0.0
      %1116 = vmatpush1.msra.mxu0 0.0
      %1117 = vmatprep.subr.mxu0 0.0
      %1118 = vmatpush1.msra.mxu0 0.0
      %1119 = vmatprep.subr.mxu0 0.0
      %1120 = vmatpush1.msra.mxu0 0.0
      %1121 = vmatprep.subr.mxu0 0.0
      %1122 = vmatpush1.msra.mxu0 0.0
      %1123 = vmatprep.subr.mxu0 0.0
      %1124 = vmatpush1.msra.mxu0 0.0
      %1125 = vmatprep.subr.mxu0 0.0
      %1126 = vmatpush1.msra.mxu0 0.0
      %1127 = vmatprep.subr.mxu0 0.0
      %1128 = vmatpush1.msra.mxu0 0.0
      %1129 = vmatprep.subr.mxu0 0.0
      %1130 = vmatpush1.msra.mxu0 0.0
      %1131 = vmatprep.subr.mxu0 0.0
      %1132 = vmatpush1.msra.mxu0 0.0
      %1133 = vmatprep.subr.mxu0 0.0
      %1134 = vmatpush1.msra.mxu0 0.0
      %1135 = vmatprep.subr.mxu0 0.0
      %1136 = vmatpush1.msra.mxu0 0.0
      %1137 = vmatprep.subr.mxu0 0.0
      %1138 = vmatpush1.msra.mxu0 0.0
      %1139 = vmatprep.subr.mxu0 0.0
      %1140 = vmatpush1.msra.mxu0 0.0
      %1141 = vmatprep.subr.mxu0 0.0
      %1142 = vmatpush1.msra.mxu0 0.0
      %1143 = vmatprep.subr.mxu0 0.0
      %1144 = vmatpush1.msra.mxu0 0.0
      %1145 = vmatprep.subr.mxu0 0.0
      %1146 = vmatpush1.msra.mxu0 0.0
      %1147 = vmatprep.subr.mxu0 0.0
      %1148 = vmatpush1.msra.mxu0 0.0
      %1149 = vmatprep.subr.mxu0 0.0
      %1150 = vmatpush1.msra.mxu0 0.0
      %1151 = vmatprep.subr.mxu0 0.0
      %1152 = vmatpush1.msra.mxu0 0.0
      %1153 = vmatprep.mubr.f32.mxu0 0.0
      %1154 = vmatmul.mubr.f32.gmra.mrb[0].mxu0 %v1016
      %v1155 = vpop.f32.mrb[0].mxu0
      %v1156 = vadd.f32 %v1013, %v1155
      %v1157 = vpop.f32.mrb[0].mxu0
      %v1158 = vadd.f32 %v1013, %v1157
      %1159 = vdwg.mxu0
      %1160 = vxpose.xlu0.b32.start [1/16] %v1085, 128
      %1161 = vxpose.xlu0.b32.cont [2/16] 0.0, 128
      %1162 = vxpose.xlu0.b32.cont [3/16] 0.0, 128
      %1163 = vxpose.xlu0.b32.cont [4/16] 0.0, 128
      %1164 = vxpose.xlu0.b32.cont [5/16] 0.0, 128
      %1165 = vxpose.xlu0.b32.cont [6/16] 0.0, 128
      %1166 = vxpose.xlu0.b32.cont [7/16] 0.0, 128
      %1167 = vxpose.xlu0.b32.cont [8/16] 0.0, 128
      %1168 = vxpose.xlu0.b32.cont [9/16] 0.0, 128
      %1169 = vxpose.xlu0.b32.cont [10/16] 0.0, 128
      %1170 = vxpose.xlu0.b32.cont [11/16] 0.0, 128
      %1171 = vxpose.xlu0.b32.cont [12/16] 0.0, 128
      %1172 = vxpose.xlu0.b32.cont [13/16] 0.0, 128
      %1173 = vxpose.xlu0.b32.cont [14/16] 0.0, 128
      %1174 = vxpose.xlu0.b32.cont [15/16] 0.0, 128
      %1175 = vxpose.xlu0.b32.end [16/16] 0.0, 128
      %v1176 = vpop.trf.xlu0
      %v1177 = vpop.trf.xlu0
      %v1178 = vpop.trf.xlu0
      %v1179 = vpop.trf.xlu0
      %v1180 = vpop.trf.xlu0
      %v1181 = vpop.trf.xlu0
      %v1182 = vpop.trf.xlu0
      %v1183 = vpop.trf.xlu0
      %v1184 = vpop.trf.xlu0
      %v1185 = vpop.trf.xlu0
      %v1186 = vpop.trf.xlu0
      %v1187 = vpop.trf.xlu0
      %v1188 = vpop.trf.xlu0
      %v1189 = vpop.trf.xlu0
      %v1190 = vpop.trf.xlu0
      %v1191 = vpop.trf.xlu0
      %1192 = vxpose.xlu0.b32.start [1/16] %v1087, 128
      %1193 = vxpose.xlu0.b32.cont [2/16] 0.0, 128
      %1194 = vxpose.xlu0.b32.cont [3/16] 0.0, 128
      %1195 = vxpose.xlu0.b32.cont [4/16] 0.0, 128
      %1196 = vxpose.xlu0.b32.cont [5/16] 0.0, 128
      %1197 = vxpose.xlu0.b32.cont [6/16] 0.0, 128
      %1198 = vxpose.xlu0.b32.cont [7/16] 0.0, 128
      %1199 = vxpose.xlu0.b32.cont [8/16] 0.0, 128
      %1200 = vxpose.xlu0.b32.cont [9/16] 0.0, 128
      %1201 = vxpose.xlu0.b32.cont [10/16] 0.0, 128
      %1202 = vxpose.xlu0.b32.cont [11/16] 0.0, 128
      %1203 = vxpose.xlu0.b32.cont [12/16] 0.0, 128
      %1204 = vxpose.xlu0.b32.cont [13/16] 0.0, 128
      %1205 = vxpose.xlu0.b32.cont [14/16] 0.0, 128
      %1206 = vxpose.xlu0.b32.cont [15/16] 0.0, 128
      %1207 = vxpose.xlu0.b32.end [16/16] 0.0, 128
      %v1208 = vpop.trf.xlu0
      %v1209 = vpop.trf.xlu0
      %v1210 = vpop.trf.xlu0
      %v1211 = vpop.trf.xlu0
      %v1212 = vpop.trf.xlu0
      %v1213 = vpop.trf.xlu0
      %v1214 = vpop.trf.xlu0
      %v1215 = vpop.trf.xlu0
      %v1216 = vpop.trf.xlu0
      %v1217 = vpop.trf.xlu0
      %v1218 = vpop.trf.xlu0
      %v1219 = vpop.trf.xlu0
      %v1220 = vpop.trf.xlu0
      %v1221 = vpop.trf.xlu0
      %v1222 = vpop.trf.xlu0
      %v1223 = vpop.trf.xlu0
      %1224 = vxpose.xlu0.b32.start [1/16] %v1156, 128
      %1225 = vxpose.xlu0.b32.cont [2/16] 0.0, 128
      %1226 = vxpose.xlu0.b32.cont [3/16] 0.0, 128
      %1227 = vxpose.xlu0.b32.cont [4/16] 0.0, 128
      %1228 = vxpose.xlu0.b32.cont [5/16] 0.0, 128
      %1229 = vxpose.xlu0.b32.cont [6/16] 0.0, 128
      %1230 = vxpose.xlu0.b32.cont [7/16] 0.0, 128
      %1231 = vxpose.xlu0.b32.cont [8/16] 0.0, 128
      %1232 = vxpose.xlu0.b32.cont [9/16] 0.0, 128
      %1233 = vxpose.xlu0.b32.cont [10/16] 0.0, 128
      %1234 = vxpose.xlu0.b32.cont [11/16] 0.0, 128
      %1235 = vxpose.xlu0.b32.cont [12/16] 0.0, 128
      %1236 = vxpose.xlu0.b32.cont [13/16] 0.0, 128
      %1237 = vxpose.xlu0.b32.cont [14/16] 0.0, 128
      %1238 = vxpose.xlu0.b32.cont [15/16] 0.0, 128
      %1239 = vxpose.xlu0.b32.end [16/16] 0.0, 128
      %v1240 = vpop.trf.xlu0
      %v1241 = vpop.trf.xlu0
      %v1242 = vpop.trf.xlu0
      %v1243 = vpop.trf.xlu0
      %v1244 = vpop.trf.xlu0
      %v1245 = vpop.trf.xlu0
      %v1246 = vpop.trf.xlu0
      %v1247 = vpop.trf.xlu0
      %v1248 = vpop.trf.xlu0
      %v1249 = vpop.trf.xlu0
      %v1250 = vpop.trf.xlu0
      %v1251 = vpop.trf.xlu0
      %v1252 = vpop.trf.xlu0
      %v1253 = vpop.trf.xlu0
      %v1254 = vpop.trf.xlu0
      %v1255 = vpop.trf.xlu0
      %1256 = vxpose.xlu0.b32.start [1/16] %v1158, 128
      %1257 = vxpose.xlu0.b32.cont [2/16] 0.0, 128
      %1258 = vxpose.xlu0.b32.cont [3/16] 0.0, 128
      %1259 = vxpose.xlu0.b32.cont [4/16] 0.0, 128
      %1260 = vxpose.xlu0.b32.cont [5/16] 0.0, 128
      %1261 = vxpose.xlu0.b32.cont [6/16] 0.0, 128
      %1262 = vxpose.xlu0.b32.cont [7/16] 0.0, 128
      %1263 = vxpose.xlu0.b32.cont [8/16] 0.0, 128
      %1264 = vxpose.xlu0.b32.cont [9/16] 0.0, 128
      %1265 = vxpose.xlu0.b32.cont [10/16] 0.0, 128
      %1266 = vxpose.xlu0.b32.cont [11/16] 0.0, 128
      %1267 = vxpose.xlu0.b32.cont [12/16] 0.0, 128
      %1268 = vxpose.xlu0.b32.cont [13/16] 0.0, 128
      %1269 = vxpose.xlu0.b32.cont [14/16] 0.0, 128
      %1270 = vxpose.xlu0.b32.cont [15/16] 0.0, 128
      %1271 = vxpose.xlu0.b32.end [16/16] 0.0, 128
      %v1272 = vpop.trf.xlu0
      %v1273 = vpop.trf.xlu0
      %v1274 = vpop.trf.xlu0
      %v1275 = vpop.trf.xlu0
      %v1276 = vpop.trf.xlu0
      %v1277 = vpop.trf.xlu0
      %v1278 = vpop.trf.xlu0
      %v1279 = vpop.trf.xlu0
      %v1280 = vpop.trf.xlu0
      %v1281 = vpop.trf.xlu0
      %v1282 = vpop.trf.xlu0
      %v1283 = vpop.trf.xlu0
      %v1284 = vpop.trf.xlu0
      %v1285 = vpop.trf.xlu0
      %v1286 = vpop.trf.xlu0
      %v1287 = vpop.trf.xlu0
      %vm1288 = vcmask 64512
      %1289 = vst.msk [vmem:[%s280] sm:$0xff] %vm1288, %v1176
      %1290 = vst.msk [vmem:[%s280 + $0x8] sm:$0xff] %vm1288, %v1177
      %1291 = vst.msk [vmem:[%s280 + $0x10] sm:$0xff] %vm1288, %v1178
      %1292 = vst.msk [vmem:[%s280 + $0x18] sm:$0xff] %vm1288, %v1179
      %1293 = vst.msk [vmem:[%s280 + $0x20] sm:$0xff] %vm1288, %v1180
      %1294 = vst.msk [vmem:[%s280 + $0x28] sm:$0xff] %vm1288, %v1181
      %1295 = vst.msk [vmem:[%s280 + $0x30] sm:$0xff] %vm1288, %v1182
      %1296 = vst.msk [vmem:[%s280 + $0x38] sm:$0xff] %vm1288, %v1183
      %1297 = vst.msk [vmem:[%s280 + $0x40] sm:$0xff] %vm1288, %v1184
      %1298 = vst.msk [vmem:[%s280 + $0x48] sm:$0xff] %vm1288, %v1185
      %1299 = vst.msk [vmem:[%s280 + $0x50] sm:$0xff] %vm1288, %v1186
      %1300 = vst.msk [vmem:[%s280 + $0x58] sm:$0xff] %vm1288, %v1187
      %1301 = vst.msk [vmem:[%s280 + $0x60] sm:$0xff] %vm1288, %v1188
      %1302 = vst.msk [vmem:[%s280 + $0x68] sm:$0xff] %vm1288, %v1189
      %1303 = vst.msk [vmem:[%s280 + $0x70] sm:$0xff] %vm1288, %v1190
      %1304 = vst.msk [vmem:[%s280 + $0x78] sm:$0xff] %vm1288, %v1191
      %1305 = vst.msk [vmem:[%s280 + $0x80] sm:$0xff] %vm1288, %v1208
      %1306 = vst.msk [vmem:[%s280 + $0x88] sm:$0xff] %vm1288, %v1209
      %1307 = vst.msk [vmem:[%s280 + $0x90] sm:$0xff] %vm1288, %v1210
      %1308 = vst.msk [vmem:[%s280 + $0x98] sm:$0xff] %vm1288, %v1211
      %1309 = vst.msk [vmem:[%s280 + $0xa0] sm:$0xff] %vm1288, %v1212
      %1310 = vst.msk [vmem:[%s280 + $0xa8] sm:$0xff] %vm1288, %v1213
      %1311 = vst.msk [vmem:[%s280 + $0xb0] sm:$0xff] %vm1288, %v1214
      %1312 = vst.msk [vmem:[%s280 + $0xb8] sm:$0xff] %vm1288, %v1215
      %1313 = vst.msk [vmem:[%s280 + $0xc0] sm:$0xff] %vm1288, %v1216
      %1314 = vst.msk [vmem:[%s280 + $0xc8] sm:$0xff] %vm1288, %v1217
      %1315 = vst.msk [vmem:[%s280 + $0xd0] sm:$0xff] %vm1288, %v1218
      %1316 = vst.msk [vmem:[%s280 + $0xd8] sm:$0xff] %vm1288, %v1219
      %1317 = vst.msk [vmem:[%s280 + $0xe0] sm:$0xff] %vm1288, %v1220
      %1318 = vst.msk [vmem:[%s280 + $0xe8] sm:$0xff] %vm1288, %v1221
      %1319 = vst.msk [vmem:[%s280 + $0xf0] sm:$0xff] %vm1288, %v1222
      %1320 = vst.msk [vmem:[%s280 + $0xf8] sm:$0xff] %vm1288, %v1223
      %1321 = vst.msk [vmem:[%s280 + $0x100] sm:$0xff] %vm1288, %v1240
      %1322 = vst.msk [vmem:[%s280 + $0x108] sm:$0xff] %vm1288, %v1241
      %1323 = vst.msk [vmem:[%s280 + $0x110] sm:$0xff] %vm1288, %v1242
      %1324 = vst.msk [vmem:[%s280 + $0x118] sm:$0xff] %vm1288, %v1243
      %1325 = vst.msk [vmem:[%s280 + $0x120] sm:$0xff] %vm1288, %v1244
      %1326 = vst.msk [vmem:[%s280 + $0x128] sm:$0xff] %vm1288, %v1245
      %1327 = vst.msk [vmem:[%s280 + $0x130] sm:$0xff] %vm1288, %v1246
      %1328 = vst.msk [vmem:[%s280 + $0x138] sm:$0xff] %vm1288, %v1247
      %1329 = vst.msk [vmem:[%s280 + $0x140] sm:$0xff] %vm1288, %v1248
      %1330 = vst.msk [vmem:[%s280 + $0x148] sm:$0xff] %vm1288, %v1249
      %1331 = vst.msk [vmem:[%s280 + $0x150] sm:$0xff] %vm1288, %v1250
      %1332 = vst.msk [vmem:[%s280 + $0x158] sm:$0xff] %vm1288, %v1251
      %1333 = vst.msk [vmem:[%s280 + $0x160] sm:$0xff] %vm1288, %v1252
      %1334 = vst.msk [vmem:[%s280 + $0x168] sm:$0xff] %vm1288, %v1253
      %1335 = vst.msk [vmem:[%s280 + $0x170] sm:$0xff] %vm1288, %v1254
      %1336 = vst.msk [vmem:[%s280 + $0x178] sm:$0xff] %vm1288, %v1255
      %1337 = vst.msk [vmem:[%s280 + $0x180] sm:$0xff] %vm1288, %v1272
      %1338 = vst.msk [vmem:[%s280 + $0x188] sm:$0xff] %vm1288, %v1273
      %1339 = vst.msk [vmem:[%s280 + $0x190] sm:$0xff] %vm1288, %v1274
      %1340 = vst.msk [vmem:[%s280 + $0x198] sm:$0xff] %vm1288, %v1275
      %1341 = vst.msk [vmem:[%s280 + $0x1a0] sm:$0xff] %vm1288, %v1276
      %1342 = vst.msk [vmem:[%s280 + $0x1a8] sm:$0xff] %vm1288, %v1277
      %1343 = vst.msk [vmem:[%s280 + $0x1b0] sm:$0xff] %vm1288, %v1278
      %1344 = vst.msk [vmem:[%s280 + $0x1b8] sm:$0xff] %vm1288, %v1279
      %1345 = vst.msk [vmem:[%s280 + $0x1c0] sm:$0xff] %vm1288, %v1280
      %1346 = vst.msk [vmem:[%s280 + $0x1c8] sm:$0xff] %vm1288, %v1281
      %1347 = vst.msk [vmem:[%s280 + $0x1d0] sm:$0xff] %vm1288, %v1282
      %1348 = vst.msk [vmem:[%s280 + $0x1d8] sm:$0xff] %vm1288, %v1283
      %1349 = vst.msk [vmem:[%s280 + $0x1e0] sm:$0xff] %vm1288, %v1284
      %1350 = vst.msk [vmem:[%s280 + $0x1e8] sm:$0xff] %vm1288, %v1285
      %1351 = vst.msk [vmem:[%s280 + $0x1f0] sm:$0xff] %vm1288, %v1286
      %1352 = vst.msk [vmem:[%s280 + $0x1f8] sm:$0xff] %vm1288, %v1287
      %s1353 = smul.u32 64, %s18
      %p1354 = scmp.lt.s32.totalorder %s1353, 255
      %s1355 = scalar_select %p1354, %s1353, 255
      %s1356 = smul.addr %s1355, 8
      %s1357 = scalar_lea.vmem %s7, %s1356
      // Predicated region
      $region49: #{mlp_forward.1} parent=47 // pred_check
        %p1358 = pneg %p188
      $region50: #{mlp_forward.1} parent=47 // pred_check_branch
        %1360 = sbr.rel (%p1358) target = $region52
      $region51: #{mlp_forward.1} parent=47 // pred_region
        %s1361 = smul.u32 64, %s18
      $region52: #{mlp_forward.1} parent=47 // pred_fallthru
        _
    $region48: #{mlp_forward.1} parent=5 // pred_fallthru
      _
    %p1362 = scmp.le.s32.totalorder 2, %s13
    // Predicated region
    $region53: #{mlp_forward.1} parent=5 // pred_check
      %p1363 = pneg %p1362
    $region54: #{mlp_forward.1} parent=5 // pred_check_branch
      %1365 = sbr.rel (%p1363) target = $region56
    $region55: #{mlp_forward.1} parent=5 // pred_region
      %s1366 = ssub.s32 %s13, 2
      // Predicated region
      $region57: #{mlp_forward.1} parent=55 // pred_check
        %p1367 = pneg %p194
      $region58: #{mlp_forward.1} parent=55 // pred_check_branch
        %1369 = sbr.rel (%p1367) target = $region60
      $region59: #{mlp_forward.1} parent=55 // pred_region
        %s1370 = smul.u32 64, %s19
        %p1371 = scmp.lt.s32.totalorder %s1370, 255
        %s1372 = scalar_select %p1371, %s1370, 255
        %s1373 = smul.addr %s1372, 8
        %s1374 = scalar_lea.vmem %s7, %s1373
      $region60: #{mlp_forward.1} parent=55 // pred_fallthru
        _
    $region56: #{mlp_forward.1} parent=5 // pred_fallthru
      _
  $region6: #{mlp_forward.1} parent=0 // loop_footer
    %s17 = sadd.s32 1, %s13
  $region7: #{mlp_forward.1} parent=0 // loop_footer_branch
    %12 = sbr.rel target = $region3
  $region8: #{mlp_forward.1} parent=0 // loop_exit
    _

</llo_original>
